<compile_context>
chip_gen: v5e
topology: v5e:2x2
jax: 0.10.0
libtpu: 0.0.40
codegen_flags: <defaults>
</compile_context>

<pallas_src>
import jax
import jax.numpy as jnp
from jax.experimental import pallas as pl
from jax.experimental.pallas import tpu as pltpu

LANE = 128      # TPU lane width (last dim of a vreg)
SUBLANE = 8     # f32 sublane count (second-to-last dim of a vreg)
N_LAYERS = 6


def _round_up(x, m):
    return ((x + m - 1) // m) * m


def _mlp_kernel(x_ref, w_ref, b_ref, o_ref):
    """x_ref: (TILE_B, 128) compute dtype; w_ref: (6, 128, 128) compute dtype;
    b_ref: (8, 128) f32; o_ref: (TILE_B, 128) f32.  All layers zero-padded to
    128 lanes, so every matmul is a full, unmasked (TILE_B,128)@(128,128)."""
    b_all = b_ref[...]            # one load for all 6 biases (f32)
    h = x_ref[...]                # (TILE_B, 128), compute dtype
    for l in range(N_LAYERS):     # statically unrolled; w_ref[l] is a static slice
        acc = jnp.dot(h, w_ref[l], preferred_element_type=jnp.float32)
        acc = acc + b_all[l:l + 1, :]                 # (1,128) sublane broadcast
        if l < N_LAYERS - 1:
            h = jnp.maximum(acc, 0.0).astype(x_ref.dtype)   # ReLU in f32, cast for MXU
        else:
            o_ref[...] = acc.astype(o_ref.dtype)            # lane-dense full store


def pack_params(params, compute_dtype):
    """Pack 6 (W, b) pairs into one zero-padded weight slab and one bias slab."""
    n = len(params)
    w_stack = jnp.zeros((n, LANE, LANE), compute_dtype)
    b_stack = jnp.zeros((_round_up(n, SUBLANE), LANE), jnp.float32)
    for l, (w, b) in enumerate(params):
        fi, fo = w.shape
        w_stack = w_stack.at[l, :fi, :fo].set(w.astype(compute_dtype))
        b_stack = b_stack.at[l, :fo].set(jnp.reshape(b, (-1,)).astype(jnp.float32))
    return w_stack, b_stack


def net_forward(x, params, *, compute_dtype=jnp.bfloat16, max_tile_b=1024):
    """x: (B, in_dims) f32; params: list of (W (fan_in, fan_out), b (fan_out,))."""
    B, in_dims = x.shape
    out_dims = params[-1][0].shape[1]
    assert in_dims <= LANE and out_dims <= LANE
    for w, _ in params:
        assert w.shape[0] <= LANE and w.shape[1] <= LANE

    # Batch tiling: big multiple of 8 per step (amortize ~0.35us/step overhead),
    # VMEM is never the limiter for this model (few MB even at tile_b=4096).
    tile_b = _round_up(min(max_tile_b, _round_up(B, SUBLANE)), SUBLANE)
    b_pad = _round_up(B, tile_b)
    grid = (b_pad // tile_b,)

    w_stack, b_stack = pack_params(params, compute_dtype)

    # Lane-dense, sublane-aligned, zero-padded input slab.
    x_pad = jnp.zeros((b_pad, LANE), compute_dtype).at[:B, :in_dims].set(
        x.astype(compute_dtype))

    out_padded = pl.pallas_call(
        _mlp_kernel,
        out_shape=jax.ShapeDtypeStruct((b_pad, LANE), jnp.float32),
        grid=grid,
        in_specs=[
            pl.BlockSpec((tile_b, LANE), lambda i: (i, 0)),        # activations: pipelined
            pl.BlockSpec(w_stack.shape, lambda i: (0, 0, 0)),      # weights: VMEM-resident
            pl.BlockSpec(b_stack.shape, lambda i: (0, 0)),         # biases: VMEM-resident
        ],
        out_specs=pl.BlockSpec((tile_b, LANE), lambda i: (i, 0)),
        compiler_params=pltpu.CompilerParams(
            dimension_semantics=("parallel",)),                    # v7x: shard over 2 TCs
    )(x_pad, w_stack, b_stack)

    return out_padded[:B, :out_dims]


def init_params(key, in_dims, out_dims):
    """PyTorch-style uniform(-1/sqrt(fan_in), 1/sqrt(fan_in)) init.
    Weights stored as (fan_in, fan_out) so the kernel does x @ W + b."""
    sizes = [in_dims, 16, 32, 64, 32, 16, out_dims]
    params = []
    for i in range(len(sizes) - 1):
        fan_in, fan_out = sizes[i], sizes[i + 1]
        key, kw, kb = jax.random.split(key, 3)
        bound = 1.0 / (fan_in ** 0.5)
        w = jax.random.uniform(kw, (fan_in, fan_out), jnp.float32, -bound, bound)
        b = jax.random.uniform(kb, (fan_out,), jnp.float32, -bound, bound)
        params.append((w, b))
    return params


def reference_forward(x, params, compute_dtype=jnp.float32):
    """Pure-JAX reference; compute_dtype mirrors the kernel's operand quantization."""
    h = x.astype(compute_dtype)
    for i, (w, b) in enumerate(params):
        h = jnp.dot(h, w.astype(compute_dtype),
                    preferred_element_type=jnp.float32) + jnp.reshape(b, (1, -1))
        if i < len(params) - 1:
            h = jnp.maximum(h, 0.0).astype(compute_dtype)
    return h


if __name__ == "__main__":
    key = jax.random.PRNGKey(0)
    in_dims, out_dims, batch = 4, 2, 8

    k_x, k_p, k_x2 = jax.random.split(key, 3)
    x = jax.random.normal(k_x, (batch, in_dims), jnp.float32)
    params = init_params(k_p, in_dims, out_dims)

    ref = reference_forward(x, params)

    # f32 compute path: exact parity with the f32 reference.
    out_f32 = jax.block_until_ready(
        net_forward(x, params, compute_dtype=jnp.float32))
    assert out_f32.shape == (batch, out_dims)
    assert jnp.allclose(out_f32, ref, atol=1e-4, rtol=1e-4), "f32 mismatch vs reference"

    # bf16 compute path (MXU-native, recommended on v6e/v7x): compare against a
    # matching bf16-quantized reference (tight) and the f32 reference (loose).
    out_bf16 = jax.block_until_ready(
        net_forward(x, params, compute_dtype=jnp.bfloat16))
    ref_q = reference_forward(x, params, compute_dtype=jnp.bfloat16)
    assert jnp.allclose(out_bf16, ref_q, atol=1e-2, rtol=1e-2), "bf16 mismatch vs bf16 ref"
    assert jnp.allclose(out_bf16, ref, atol=5e-2, rtol=5e-2), "bf16 drifted from f32 ref"

    # Non-multiple batch exercising the multi-step batch grid + padding path.
    x2 = jax.random.normal(k_x2, (37, in_dims), jnp.float32)
    out2 = jax.block_until_ready(
        net_forward(x2, params, compute_dtype=jnp.float32, max_tile_b=16))
    ref2 = reference_forward(x2, params)
    assert out2.shape == (37, out_dims)
    assert jnp.allclose(out2, ref2, atol=1e-4, rtol=1e-4), "tiled-batch mismatch"

    print("KERNEL_OK")
</pallas_src>

<mosaic_0001>
module attributes {stable_mosaic.version = 11 : i64} {
  func.func @_mlp_kernel(%arg0: i32, %arg1: memref<8x128xf32, #tpu.memory_space<vmem>>, %arg2: memref<6x128x128xf32, #tpu.memory_space<vmem>>, %arg3: memref<8x128xf32, #tpu.memory_space<vmem>>, %arg4: memref<8x128xf32, #tpu.memory_space<vmem>>) attributes {dimension_semantics = [#tpu.dimension_semantics<parallel>], iteration_bounds = array<i64: 1>, scalar_prefetch = 0 : i64, scratch_operands = 0 : i64, tpu.core_type = #tpu.core_type<tc>, window_params = [{transform_indices = @transform_0, window_bounds = array<i64: 8, 128>}, {pipeline_mode = #tpu.pipeline_mode<synchronous>, transform_indices = @transform_1, window_bounds = array<i64: 6, 128, 128>}, {pipeline_mode = #tpu.pipeline_mode<synchronous>, transform_indices = @transform_2, window_bounds = array<i64: 8, 128>}, {transform_indices = @transform_3, window_bounds = array<i64: 8, 128>}]} {
    %c0 = arith.constant 0 : index
    %c0_0 = arith.constant 0 : index
    %0 = vector.load %arg3[%c0, %c0_0] : memref<8x128xf32, #tpu.memory_space<vmem>>, vector<8x128xf32>
    %c0_1 = arith.constant 0 : index
    %c0_2 = arith.constant 0 : index
    %1 = vector.load %arg1[%c0_1, %c0_2] : memref<8x128xf32, #tpu.memory_space<vmem>>, vector<8x128xf32>
    %c0_3 = arith.constant 0 : index
    %c0_4 = arith.constant 0 : index
    %c0_5 = arith.constant 0 : index
    %2 = vector.load %arg2[%c0_3, %c0_4, %c0_5] : memref<6x128x128xf32, #tpu.memory_space<vmem>>, vector<1x128x128xf32>
    %3 = vector.shape_cast %2 : vector<1x128x128xf32> to vector<128x128xf32>
    %cst = arith.constant dense<0.000000e+00> : vector<8x128xf32>
    %4 = tpu.matmul %1, %3, %cst {dimension_numbers = #tpu.dot_dimension_numbers<[1], [0], [0], [1], [0, 0, 1, 1], [], []>} : vector<8x128xf32>, vector<128x128xf32>, vector<8x128xf32> -> vector<8x128xf32>
    %5 = vector.extract_strided_slice %0 {offsets = [0, 0], sizes = [1, 128], strides = [1, 1]} : vector<8x128xf32> to vector<1x128xf32>
    %6 = vector.broadcast %5 : vector<1x128xf32> to vector<8x128xf32>
    %7 = arith.addf %4, %6 : vector<8x128xf32>
    %cst_6 = arith.constant 0.000000e+00 : f32
    %8 = vector.broadcast %cst_6 : f32 to vector<8x128xf32>
    %9 = arith.maximumf %7, %8 : vector<8x128xf32>
    %c1 = arith.constant 1 : index
    %c0_7 = arith.constant 0 : index
    %c0_8 = arith.constant 0 : index
    %10 = vector.load %arg2[%c1, %c0_7, %c0_8] : memref<6x128x128xf32, #tpu.memory_space<vmem>>, vector<1x128x128xf32>
    %11 = vector.shape_cast %10 : vector<1x128x128xf32> to vector<128x128xf32>
    %cst_9 = arith.constant dense<0.000000e+00> : vector<8x128xf32>
    %12 = tpu.matmul %9, %11, %cst_9 {dimension_numbers = #tpu.dot_dimension_numbers<[1], [0], [0], [1], [0, 0, 1, 1], [], []>} : vector<8x128xf32>, vector<128x128xf32>, vector<8x128xf32> -> vector<8x128xf32>
    %13 = vector.extract_strided_slice %0 {offsets = [1, 0], sizes = [1, 128], strides = [1, 1]} : vector<8x128xf32> to vector<1x128xf32>
    %14 = vector.broadcast %13 : vector<1x128xf32> to vector<8x128xf32>
    %15 = arith.addf %12, %14 : vector<8x128xf32>
    %cst_10 = arith.constant 0.000000e+00 : f32
    %16 = vector.broadcast %cst_10 : f32 to vector<8x128xf32>
    %17 = arith.maximumf %15, %16 : vector<8x128xf32>
    %c2 = arith.constant 2 : index
    %c0_11 = arith.constant 0 : index
    %c0_12 = arith.constant 0 : index
    %18 = vector.load %arg2[%c2, %c0_11, %c0_12] : memref<6x128x128xf32, #tpu.memory_space<vmem>>, vector<1x128x128xf32>
    %19 = vector.shape_cast %18 : vector<1x128x128xf32> to vector<128x128xf32>
    %cst_13 = arith.constant dense<0.000000e+00> : vector<8x128xf32>
    %20 = tpu.matmul %17, %19, %cst_13 {dimension_numbers = #tpu.dot_dimension_numbers<[1], [0], [0], [1], [0, 0, 1, 1], [], []>} : vector<8x128xf32>, vector<128x128xf32>, vector<8x128xf32> -> vector<8x128xf32>
    %21 = vector.extract_strided_slice %0 {offsets = [2, 0], sizes = [1, 128], strides = [1, 1]} : vector<8x128xf32> to vector<1x128xf32>
    %22 = vector.broadcast %21 : vector<1x128xf32> to vector<8x128xf32>
    %23 = arith.addf %20, %22 : vector<8x128xf32>
    %cst_14 = arith.constant 0.000000e+00 : f32
    %24 = vector.broadcast %cst_14 : f32 to vector<8x128xf32>
    %25 = arith.maximumf %23, %24 : vector<8x128xf32>
    %c3 = arith.constant 3 : index
    %c0_15 = arith.constant 0 : index
    %c0_16 = arith.constant 0 : index
    %26 = vector.load %arg2[%c3, %c0_15, %c0_16] : memref<6x128x128xf32, #tpu.memory_space<vmem>>, vector<1x128x128xf32>
    %27 = vector.shape_cast %26 : vector<1x128x128xf32> to vector<128x128xf32>
    %cst_17 = arith.constant dense<0.000000e+00> : vector<8x128xf32>
    %28 = tpu.matmul %25, %27, %cst_17 {dimension_numbers = #tpu.dot_dimension_numbers<[1], [0], [0], [1], [0, 0, 1, 1], [], []>} : vector<8x128xf32>, vector<128x128xf32>, vector<8x128xf32> -> vector<8x128xf32>
    %29 = vector.extract_strided_slice %0 {offsets = [3, 0], sizes = [1, 128], strides = [1, 1]} : vector<8x128xf32> to vector<1x128xf32>
    %30 = vector.broadcast %29 : vector<1x128xf32> to vector<8x128xf32>
    %31 = arith.addf %28, %30 : vector<8x128xf32>
    %cst_18 = arith.constant 0.000000e+00 : f32
    %32 = vector.broadcast %cst_18 : f32 to vector<8x128xf32>
    %33 = arith.maximumf %31, %32 : vector<8x128xf32>
    %c4 = arith.constant 4 : index
    %c0_19 = arith.constant 0 : index
    %c0_20 = arith.constant 0 : index
    %34 = vector.load %arg2[%c4, %c0_19, %c0_20] : memref<6x128x128xf32, #tpu.memory_space<vmem>>, vector<1x128x128xf32>
    %35 = vector.shape_cast %34 : vector<1x128x128xf32> to vector<128x128xf32>
    %cst_21 = arith.constant dense<0.000000e+00> : vector<8x128xf32>
    %36 = tpu.matmul %33, %35, %cst_21 {dimension_numbers = #tpu.dot_dimension_numbers<[1], [0], [0], [1], [0, 0, 1, 1], [], []>} : vector<8x128xf32>, vector<128x128xf32>, vector<8x128xf32> -> vector<8x128xf32>
    %37 = vector.extract_strided_slice %0 {offsets = [4, 0], sizes = [1, 128], strides = [1, 1]} : vector<8x128xf32> to vector<1x128xf32>
    %38 = vector.broadcast %37 : vector<1x128xf32> to vector<8x128xf32>
    %39 = arith.addf %36, %38 : vector<8x128xf32>
    %cst_22 = arith.constant 0.000000e+00 : f32
    %40 = vector.broadcast %cst_22 : f32 to vector<8x128xf32>
    %41 = arith.maximumf %39, %40 : vector<8x128xf32>
    %c5 = arith.constant 5 : index
    %c0_23 = arith.constant 0 : index
    %c0_24 = arith.constant 0 : index
    %42 = vector.load %arg2[%c5, %c0_23, %c0_24] : memref<6x128x128xf32, #tpu.memory_space<vmem>>, vector<1x128x128xf32>
    %43 = vector.shape_cast %42 : vector<1x128x128xf32> to vector<128x128xf32>
    %cst_25 = arith.constant dense<0.000000e+00> : vector<8x128xf32>
    %44 = tpu.matmul %41, %43, %cst_25 {dimension_numbers = #tpu.dot_dimension_numbers<[1], [0], [0], [1], [0, 0, 1, 1], [], []>} : vector<8x128xf32>, vector<128x128xf32>, vector<8x128xf32> -> vector<8x128xf32>
    %45 = vector.extract_strided_slice %0 {offsets = [5, 0], sizes = [1, 128], strides = [1, 1]} : vector<8x128xf32> to vector<1x128xf32>
    %46 = vector.broadcast %45 : vector<1x128xf32> to vector<8x128xf32>
    %47 = arith.addf %44, %46 : vector<8x128xf32>
    %c0_26 = arith.constant 0 : index
    %c0_27 = arith.constant 0 : index
    %48 = vector.load %arg4[%c0_26, %c0_27] : memref<8x128xf32, #tpu.memory_space<vmem>>, vector<8x128xf32>
    tpu.vector_store %arg4[%c0_26, %c0_27], %47 {strides = array<i32>} : memref<8x128xf32, #tpu.memory_space<vmem>>, vector<8x128xf32>,
    return
  }
  func.func @transform_0(%arg0: i32) -> (i32, i32) {
    %c0_i32 = arith.constant 0 : i32
    %c0_i32_0 = arith.constant 0 : i32
    return %arg0, %c0_i32 : i32, i32
  }
  func.func @transform_1(%arg0: i32) -> (i32, i32, i32) {
    %c0_i32 = arith.constant 0 : i32
    %c0_i32_0 = arith.constant 0 : i32
    %c0_i32_1 = arith.constant 0 : i32
    %c0_i32_2 = arith.constant 0 : i32
    return %c0_i32, %c0_i32_0, %c0_i32_1 : i32, i32, i32
  }
  func.func @transform_2(%arg0: i32) -> (i32, i32) {
    %c0_i32 = arith.constant 0 : i32
    %c0_i32_0 = arith.constant 0 : i32
    %c0_i32_1 = arith.constant 0 : i32
    return %c0_i32, %c0_i32_0 : i32, i32
  }
  func.func @transform_3(%arg0: i32) -> (i32, i32) {
    %c0_i32 = arith.constant 0 : i32
    %c0_i32_0 = arith.constant 0 : i32
    return %arg0, %c0_i32 : i32, i32
  }
}

</mosaic_0001>

<llo_original>
// kernel: tpu_custom_call.1
$region0: #{tpu_custom_call.1}
  #allocation0 [shape = 'u32[]', space=smem, size = 0x4, offset = 0x4, fixed_abs, tag = 'smem constant byte address 0x4 - core index']
  #allocation1 [shape = 'u32[72,128]{1,0:T(1,128)}', space=vmem, size = 0x9000, scoped, tag = 'internal scratch']
  %s0 = inlined_call_operand.hbm [shape: f32[8,128], index: 0, kind: input, shape index: {}]
  %s1 = inlined_call_operand.hbm [shape: f32[6,128,128], index: 1, kind: input, shape index: {}]
  %s2 = inlined_call_operand.hbm [shape: f32[8,128], index: 2, kind: input, shape index: {}]
  %s3 = inlined_call_operand.hbm [shape: f32[8,128], index: 3, kind: output, shape index: {}]
  %s4 = sld [smem:[#allocation0]]
  $region34: #{tpu_custom_call.1} parent=0
    _
  %s6 = ssub.s32 1, %s4
  %s7 = scalar_select 0, %s6, %s4
  $region1: #{tpu_custom_call.1} parent=0
    #allocation2 [shape = 'u8[4096]{0}', space=vmem, size = 0x1000, scoped, tag = 'input window, operand 0, single buffered']
    #allocation3 [shape = 's32[1]{0}', space=sflag, size = 0x4, scoped, tag = 'scoped memory for tpu_custom_call.1']
    #allocation4 [shape = 's32[1]{0}', space=sflag, size = 0x4, scoped, tag = 'scoped memory for tpu_custom_call.1']
    #allocation5 [shape = 'u8[393216]{0}', space=vmem, size = 0x60000, scoped, tag = 'input window, operand 1, single buffered']
    #allocation6 [shape = 's32[1]{0}', space=sflag, size = 0x4, scoped, tag = 'scoped memory for tpu_custom_call.1']
    #allocation7 [shape = 'u8[4096]{0}', space=vmem, size = 0x1000, scoped, tag = 'input window, operand 2, single buffered']
    #allocation8 [shape = 'u8[4096]{0}', space=vmem, size = 0x1000, scoped, tag = 'output window, operand 0, single buffered']
    %8 = vsyncpa [#allocation3], 0
    %9 = vsyncpa [#allocation6], 0
    %10 = vsyncpa [#allocation4], 0
    // Predicated region
    $region2: #{tpu_custom_call.1} parent=1 // pred_check
      _
    $region3: #{tpu_custom_call.1} parent=1 // pred_check_branch
      %12 = sbr.rel (0) target = $region5
    $region4: #{tpu_custom_call.1} parent=1 // pred_region
      %14 = vsyncadd [#allocation3], 0
      %s16 = sshll.u32 %s0, 4
      %s17 = int_to_ptr.hbm [resolvable:$true] %s16
      %s18 = sshll.u32 [#allocation2], 4
      %s19 = int_to_ptr.vmem [resolvable:$true] %s18
      %21 = dma.hbm_to_vmem [thread:$0]  %s17, 128, %s19, [#allocation3]
    $region5: #{tpu_custom_call.1} parent=1 // pred_fallthru
      _
    // Predicated region
    $region6: #{tpu_custom_call.1} parent=1 // pred_check
      _
    $region7: #{tpu_custom_call.1} parent=1 // pred_check_branch
      %23 = sbr.rel (0) target = $region9
    $region8: #{tpu_custom_call.1} parent=1 // pred_region
      %25 = vsyncadd [#allocation6], 0
      %s26 = sshll.u32 %s1, 4
      %s27 = int_to_ptr.hbm [resolvable:$true] %s26
      %s28 = sshll.u32 [#allocation5], 4
      %s29 = int_to_ptr.vmem [resolvable:$true] %s28
      %34 = dma.hbm_to_vmem [thread:$0]  %s27, 12288, %s29, [#allocation6], 128, 128, 8
    $region9: #{tpu_custom_call.1} parent=1 // pred_fallthru
      _
    // Predicated region
    $region10: #{tpu_custom_call.1} parent=1 // pred_check
      _
    $region11: #{tpu_custom_call.1} parent=1 // pred_check_branch
      %36 = sbr.rel (0) target = $region13
    $region12: #{tpu_custom_call.1} parent=1 // pred_region
      %38 = vsyncadd [#allocation6], 0
      %s40 = sshll.u32 %s2, 4
      %s41 = int_to_ptr.hbm [resolvable:$true] %s40
      %s42 = sshll.u32 [#allocation7], 4
      %s43 = int_to_ptr.vmem [resolvable:$true] %s42
      %45 = dma.hbm_to_vmem [thread:$0]  %s41, 128, %s43, [#allocation6]
    $region13: #{tpu_custom_call.1} parent=1 // pred_fallthru
      _
    // Predicated region
    $region14: #{tpu_custom_call.1} parent=1 // pred_check
      _
    $region15: #{tpu_custom_call.1} parent=1 // pred_check_branch
      %47 = sbr.rel (0) target = $region17
    $region16: #{tpu_custom_call.1} parent=1 // pred_region
      %49 = dma.done [#allocation3], 128
    $region17: #{tpu_custom_call.1} parent=1 // pred_fallthru
      _
    // Predicated region
    $region18: #{tpu_custom_call.1} parent=1 // pred_check
      _
    $region19: #{tpu_custom_call.1} parent=1 // pred_check_branch
      %51 = sbr.rel (0) target = $region21
    $region20: #{tpu_custom_call.1} parent=1 // pred_region
      %53 = dma.done [#allocation6], 12288
    $region21: #{tpu_custom_call.1} parent=1 // pred_fallthru
      _
    // Predicated region
    $region22: #{tpu_custom_call.1} parent=1 // pred_check
      _
    $region23: #{tpu_custom_call.1} parent=1 // pred_check_branch
      %55 = sbr.rel (0) target = $region25
    $region24: #{tpu_custom_call.1} parent=1 // pred_region
      %57 = dma.done [#allocation6], 128
    $region25: #{tpu_custom_call.1} parent=1 // pred_fallthru
      _
    %v58 = vld [vmem:[#allocation7] sm:$0xff]
    %v59 = vld [vmem:[#allocation2] sm:$0xff]
    %v60 = vld [vmem:[#allocation5] sm:$0xff]
    %v61 = vld [vmem:[#allocation5 + $0x8] sm:$0xff]
    %v62 = vld [vmem:[#allocation5 + $0x10] sm:$0xff]
    %v63 = vld [vmem:[#allocation5 + $0x18] sm:$0xff]
    %v64 = vld [vmem:[#allocation5 + $0x20] sm:$0xff]
    %v65 = vld [vmem:[#allocation5 + $0x28] sm:$0xff]
    %v66 = vld [vmem:[#allocation5 + $0x30] sm:$0xff]
    %v67 = vld [vmem:[#allocation5 + $0x38] sm:$0xff]
    %v68 = vld [vmem:[#allocation5 + $0x40] sm:$0xff]
    %v69 = vld [vmem:[#allocation5 + $0x48] sm:$0xff]
    %v70 = vld [vmem:[#allocation5 + $0x50] sm:$0xff]
    %v71 = vld [vmem:[#allocation5 + $0x58] sm:$0xff]
    %v72 = vld [vmem:[#allocation5 + $0x60] sm:$0xff]
    %v73 = vld [vmem:[#allocation5 + $0x68] sm:$0xff]
    %v74 = vld [vmem:[#allocation5 + $0x70] sm:$0xff]
    %v75 = vld [vmem:[#allocation5 + $0x78] sm:$0xff]
    %v76 = vperm.slane %v58, 0
    %77 = vmatpush.msra.mxu0 %v75
    %78 = vmatpush.msra.mxu0 %v74
    %79 = vmatpush.msra.mxu0 %v73
    %80 = vmatpush.msra.mxu0 %v72
    %81 = vmatpush.msra.mxu0 %v71
    %82 = vmatpush.msra.mxu0 %v70
    %83 = vmatpush.msra.mxu0 %v69
    %84 = vmatpush.msra.mxu0 %v68
    %85 = vmatpush.msra.mxu0 %v67
    %86 = vmatpush.msra.mxu0 %v66
    %87 = vmatpush.msra.mxu0 %v65
    %88 = vmatpush.msra.mxu0 %v64
    %89 = vmatpush.msra.mxu0 %v63
    %90 = vmatpush.msra.mxu0 %v62
    %91 = vmatpush.msra.mxu0 %v61
    %92 = vmatpush.msra.mxu0 %v60
    %93 = vmatmul.f32.gmra.mxu0 %v59
    %v94 = vpop.f32.mrf.mxu0
    %v95 = vadd.f32 %v76, %v94
    %96 = vdwg.mxu0
    %v97 = vmax.f32 %v95, 0.0
    %s98 = scalar_lea.vmem [#allocation5], 128
    %v99 = vld [vmem:[%s98] sm:$0xff]
    %v100 = vld [vmem:[%s98 + $0x8] sm:$0xff]
    %v101 = vld [vmem:[%s98 + $0x10] sm:$0xff]
    %v102 = vld [vmem:[%s98 + $0x18] sm:$0xff]
    %v103 = vld [vmem:[%s98 + $0x20] sm:$0xff]
    %v104 = vld [vmem:[%s98 + $0x28] sm:$0xff]
    %v105 = vld [vmem:[%s98 + $0x30] sm:$0xff]
    %v106 = vld [vmem:[%s98 + $0x38] sm:$0xff]
    %v107 = vld [vmem:[%s98 + $0x40] sm:$0xff]
    %v108 = vld [vmem:[%s98 + $0x48] sm:$0xff]
    %v109 = vld [vmem:[%s98 + $0x50] sm:$0xff]
    %v110 = vld [vmem:[%s98 + $0x58] sm:$0xff]
    %v111 = vld [vmem:[%s98 + $0x60] sm:$0xff]
    %v112 = vld [vmem:[%s98 + $0x68] sm:$0xff]
    %v113 = vld [vmem:[%s98 + $0x70] sm:$0xff]
    %v114 = vld [vmem:[%s98 + $0x78] sm:$0xff]
    %v115 = vperm.slane %v58, 1
    %116 = vmatpush.msra.mxu0 %v114
    %117 = vmatpush.msra.mxu0 %v113
    %118 = vmatpush.msra.mxu0 %v112
    %119 = vmatpush.msra.mxu0 %v111
    %120 = vmatpush.msra.mxu0 %v110
    %121 = vmatpush.msra.mxu0 %v109
    %122 = vmatpush.msra.mxu0 %v108
    %123 = vmatpush.msra.mxu0 %v107
    %124 = vmatpush.msra.mxu0 %v106
    %125 = vmatpush.msra.mxu0 %v105
    %126 = vmatpush.msra.mxu0 %v104
    %127 = vmatpush.msra.mxu0 %v103
    %128 = vmatpush.msra.mxu0 %v102
    %129 = vmatpush.msra.mxu0 %v101
    %130 = vmatpush.msra.mxu0 %v100
    %131 = vmatpush.msra.mxu0 %v99
    %132 = vmatmul.f32.gmra.mxu0 %v97
    %v133 = vpop.f32.mrf.mxu0
    %v134 = vadd.f32 %v115, %v133
    %135 = vdwg.mxu0
    %v136 = vmax.f32 %v134, 0.0
    %s137 = scalar_lea.vmem [#allocation5], 256
    %v138 = vld [vmem:[%s137] sm:$0xff]
    %v139 = vld [vmem:[%s137 + $0x8] sm:$0xff]
    %v140 = vld [vmem:[%s137 + $0x10] sm:$0xff]
    %v141 = vld [vmem:[%s137 + $0x18] sm:$0xff]
    %v142 = vld [vmem:[%s137 + $0x20] sm:$0xff]
    %v143 = vld [vmem:[%s137 + $0x28] sm:$0xff]
    %v144 = vld [vmem:[%s137 + $0x30] sm:$0xff]
    %v145 = vld [vmem:[%s137 + $0x38] sm:$0xff]
    %v146 = vld [vmem:[%s137 + $0x40] sm:$0xff]
    %v147 = vld [vmem:[%s137 + $0x48] sm:$0xff]
    %v148 = vld [vmem:[%s137 + $0x50] sm:$0xff]
    %v149 = vld [vmem:[%s137 + $0x58] sm:$0xff]
    %v150 = vld [vmem:[%s137 + $0x60] sm:$0xff]
    %v151 = vld [vmem:[%s137 + $0x68] sm:$0xff]
    %v152 = vld [vmem:[%s137 + $0x70] sm:$0xff]
    %v153 = vld [vmem:[%s137 + $0x78] sm:$0xff]
    %v154 = vperm.slane %v58, 2
    %155 = vmatpush.msra.mxu0 %v153
    %156 = vmatpush.msra.mxu0 %v152
    %157 = vmatpush.msra.mxu0 %v151
    %158 = vmatpush.msra.mxu0 %v150
    %159 = vmatpush.msra.mxu0 %v149
    %160 = vmatpush.msra.mxu0 %v148
    %161 = vmatpush.msra.mxu0 %v147
    %162 = vmatpush.msra.mxu0 %v146
    %163 = vmatpush.msra.mxu0 %v145
    %164 = vmatpush.msra.mxu0 %v144
    %165 = vmatpush.msra.mxu0 %v143
    %166 = vmatpush.msra.mxu0 %v142
    %167 = vmatpush.msra.mxu0 %v141
    %168 = vmatpush.msra.mxu0 %v140
    %169 = vmatpush.msra.mxu0 %v139
    %170 = vmatpush.msra.mxu0 %v138
    %171 = vmatmul.f32.gmra.mxu0 %v136
    %v172 = vpop.f32.mrf.mxu0
    %v173 = vadd.f32 %v154, %v172
    %174 = vdwg.mxu0
    %v175 = vmax.f32 %v173, 0.0
    %s176 = scalar_lea.vmem [#allocation5], 384
    %v177 = vld [vmem:[%s176] sm:$0xff]
    %v178 = vld [vmem:[%s176 + $0x8] sm:$0xff]
    %v179 = vld [vmem:[%s176 + $0x10] sm:$0xff]
    %v180 = vld [vmem:[%s176 + $0x18] sm:$0xff]
    %v181 = vld [vmem:[%s176 + $0x20] sm:$0xff]
    %v182 = vld [vmem:[%s176 + $0x28] sm:$0xff]
    %v183 = vld [vmem:[%s176 + $0x30] sm:$0xff]
    %v184 = vld [vmem:[%s176 + $0x38] sm:$0xff]
    %v185 = vld [vmem:[%s176 + $0x40] sm:$0xff]
    %v186 = vld [vmem:[%s176 + $0x48] sm:$0xff]
    %v187 = vld [vmem:[%s176 + $0x50] sm:$0xff]
    %v188 = vld [vmem:[%s176 + $0x58] sm:$0xff]
    %v189 = vld [vmem:[%s176 + $0x60] sm:$0xff]
    %v190 = vld [vmem:[%s176 + $0x68] sm:$0xff]
    %v191 = vld [vmem:[%s176 + $0x70] sm:$0xff]
    %v192 = vld [vmem:[%s176 + $0x78] sm:$0xff]
    %v193 = vperm.slane %v58, 3
    %194 = vmatpush.msra.mxu0 %v192
    %195 = vmatpush.msra.mxu0 %v191
    %196 = vmatpush.msra.mxu0 %v190
    %197 = vmatpush.msra.mxu0 %v189
    %198 = vmatpush.msra.mxu0 %v188
    %199 = vmatpush.msra.mxu0 %v187
    %200 = vmatpush.msra.mxu0 %v186
    %201 = vmatpush.msra.mxu0 %v185
    %202 = vmatpush.msra.mxu0 %v184
    %203 = vmatpush.msra.mxu0 %v183
    %204 = vmatpush.msra.mxu0 %v182
    %205 = vmatpush.msra.mxu0 %v181
    %206 = vmatpush.msra.mxu0 %v180
    %207 = vmatpush.msra.mxu0 %v179
    %208 = vmatpush.msra.mxu0 %v178
    %209 = vmatpush.msra.mxu0 %v177
    %210 = vmatmul.f32.gmra.mxu0 %v175
    %v211 = vpop.f32.mrf.mxu0
    %v212 = vadd.f32 %v193, %v211
    %213 = vdwg.mxu0
    %v214 = vmax.f32 %v212, 0.0
    %s215 = scalar_lea.vmem [#allocation5], 512
    %v216 = vld [vmem:[%s215] sm:$0xff]
    %v217 = vld [vmem:[%s215 + $0x8] sm:$0xff]
    %v218 = vld [vmem:[%s215 + $0x10] sm:$0xff]
    %v219 = vld [vmem:[%s215 + $0x18] sm:$0xff]
    %v220 = vld [vmem:[%s215 + $0x20] sm:$0xff]
    %v221 = vld [vmem:[%s215 + $0x28] sm:$0xff]
    %v222 = vld [vmem:[%s215 + $0x30] sm:$0xff]
    %v223 = vld [vmem:[%s215 + $0x38] sm:$0xff]
    %v224 = vld [vmem:[%s215 + $0x40] sm:$0xff]
    %v225 = vld [vmem:[%s215 + $0x48] sm:$0xff]
    %v226 = vld [vmem:[%s215 + $0x50] sm:$0xff]
    %v227 = vld [vmem:[%s215 + $0x58] sm:$0xff]
    %v228 = vld [vmem:[%s215 + $0x60] sm:$0xff]
    %v229 = vld [vmem:[%s215 + $0x68] sm:$0xff]
    %v230 = vld [vmem:[%s215 + $0x70] sm:$0xff]
    %v231 = vld [vmem:[%s215 + $0x78] sm:$0xff]
    %v232 = vperm.slane %v58, 4
    %233 = vmatpush.msra.mxu0 %v231
    %234 = vmatpush.msra.mxu0 %v230
    %235 = vmatpush.msra.mxu0 %v229
    %236 = vmatpush.msra.mxu0 %v228
    %237 = vmatpush.msra.mxu0 %v227
    %238 = vmatpush.msra.mxu0 %v226
    %239 = vmatpush.msra.mxu0 %v225
    %240 = vmatpush.msra.mxu0 %v224
    %241 = vmatpush.msra.mxu0 %v223
    %242 = vmatpush.msra.mxu0 %v222
    %243 = vmatpush.msra.mxu0 %v221
    %244 = vmatpush.msra.mxu0 %v220
    %245 = vmatpush.msra.mxu0 %v219
    %246 = vmatpush.msra.mxu0 %v218
    %247 = vmatpush.msra.mxu0 %v217
    %248 = vmatpush.msra.mxu0 %v216
    %249 = vmatmul.f32.gmra.mxu0 %v214
    %v250 = vpop.f32.mrf.mxu0
    %v251 = vadd.f32 %v232, %v250
    %252 = vdwg.mxu0
    %v253 = vmax.f32 %v251, 0.0
    %s254 = scalar_lea.vmem [#allocation5], 640
    %v255 = vld [vmem:[%s254] sm:$0xff]
    %v256 = vld [vmem:[%s254 + $0x8] sm:$0xff]
    %v257 = vld [vmem:[%s254 + $0x10] sm:$0xff]
    %v258 = vld [vmem:[%s254 + $0x18] sm:$0xff]
    %v259 = vld [vmem:[%s254 + $0x20] sm:$0xff]
    %v260 = vld [vmem:[%s254 + $0x28] sm:$0xff]
    %v261 = vld [vmem:[%s254 + $0x30] sm:$0xff]
    %v262 = vld [vmem:[%s254 + $0x38] sm:$0xff]
    %v263 = vld [vmem:[%s254 + $0x40] sm:$0xff]
    %v264 = vld [vmem:[%s254 + $0x48] sm:$0xff]
    %v265 = vld [vmem:[%s254 + $0x50] sm:$0xff]
    %v266 = vld [vmem:[%s254 + $0x58] sm:$0xff]
    %v267 = vld [vmem:[%s254 + $0x60] sm:$0xff]
    %v268 = vld [vmem:[%s254 + $0x68] sm:$0xff]
    %v269 = vld [vmem:[%s254 + $0x70] sm:$0xff]
    %v270 = vld [vmem:[%s254 + $0x78] sm:$0xff]
    %v271 = vperm.slane %v58, 5
    %272 = vmatpush.msra.mxu0 %v270
    %273 = vmatpush.msra.mxu0 %v269
    %274 = vmatpush.msra.mxu0 %v268
    %275 = vmatpush.msra.mxu0 %v267
    %276 = vmatpush.msra.mxu0 %v266
    %277 = vmatpush.msra.mxu0 %v265
    %278 = vmatpush.msra.mxu0 %v264
    %279 = vmatpush.msra.mxu0 %v263
    %280 = vmatpush.msra.mxu0 %v262
    %281 = vmatpush.msra.mxu0 %v261
    %282 = vmatpush.msra.mxu0 %v260
    %283 = vmatpush.msra.mxu0 %v259
    %284 = vmatpush.msra.mxu0 %v258
    %285 = vmatpush.msra.mxu0 %v257
    %286 = vmatpush.msra.mxu0 %v256
    %287 = vmatpush.msra.mxu0 %v255
    %288 = vmatmul.f32.gmra.mxu0 %v253
    %v289 = vpop.f32.mrf.mxu0
    %v290 = vadd.f32 %v271, %v289
    %291 = vdwg.mxu0
    %292 = vst [vmem:[#allocation8] sm:$0xff] %v290
    // Predicated region
    $region26: #{tpu_custom_call.1} parent=1 // pred_check
      _
    $region27: #{tpu_custom_call.1} parent=1 // pred_check_branch
      %294 = sbr.rel (0) target = $region29
    $region28: #{tpu_custom_call.1} parent=1 // pred_region
      %296 = vsyncadd [#allocation4], 0
      %s298 = sshll.u32 [#allocation8], 4
      %s299 = int_to_ptr.vmem [resolvable:$true] %s298
      %s300 = sshll.u32 %s3, 4
      %s301 = int_to_ptr.hbm [resolvable:$true] %s300
      %303 = dma.vmem_to_hbm [thread:$0]  %s299, 128, %s301, [#allocation4]
    $region29: #{tpu_custom_call.1} parent=1 // pred_fallthru
      _
    // Predicated region
    $region30: #{tpu_custom_call.1} parent=1 // pred_check
      _
    $region31: #{tpu_custom_call.1} parent=1 // pred_check_branch
      %305 = sbr.rel (0) target = $region33
    $region32: #{tpu_custom_call.1} parent=1 // pred_region
      %307 = dma.done [#allocation4], 128
    $region33: #{tpu_custom_call.1} parent=1 // pred_fallthru
      _
    %308 = vsyncpa [#allocation3], 1
    %309 = vsyncpa [#allocation6], 1
    %310 = vsyncpa [#allocation4], 1

</llo_original>
